<compile_context>
chip_gen: v5e
topology: v5e:2x2
jax: 0.10.0
libtpu: 0.0.40
codegen_flags: <defaults>
</compile_context>

<pallas_src>
import functools

import jax
import jax.numpy as jnp
from jax import lax
from jax.experimental import pallas as pl
from jax.experimental.pallas import tpu as pltpu


def _round_up(x, m):
    return ((x + m - 1) // m) * m


def _vmem_limit_bytes():
    """Per-generation VMEM limit: ~48 MiB on v7x (64 MiB/TC), 64 MiB on v5e/v6e."""
    try:
        cap = pltpu.get_tpu_info().vmem_capacity_bytes
    except Exception:
        cap = 64 * 1024 * 1024
    return int(min(cap * 3 // 4, 64 * 1024 * 1024))


def _pick_tile(l_out, cin, ck, cp, stride, itemsize, fused, vmem_limit):
    """Largest lane tile (multiple of 128) that fits the VMEM budget."""
    cap = 1024 if vmem_limit >= (60 << 20) else 512      # 1024 on v5e/v6e, 512 on v7x
    budget = vmem_limit - (4 << 20)                      # compiler scratch headroom
    # Residents that do not scale with the tile: double-buffered weights + biases
    # and (fused path) the double-buffered per-sample input signal.
    fixed = 2 * itemsize * (cp * ck + 2 * cp * cp) + 4 * 3 * cp
    if fused:
        l_in_ub = (l_out + cap) * stride + ck
        fixed += 2 * itemsize * cin * l_in_ub
    # Bytes per output column: double-buffered out block (compute dtype),
    # patch scratch / double-buffered patch stream, f32 h/z/gate intermediates.
    per_col = (2 * cp * itemsize                 # out block, x2 buffers
               + cp * 4 + cp * itemsize          # h (f32) + h cast
               + 2 * cp * 4 + 2 * cp * 4         # z (f32) + a/gate temps
               + (ck * itemsize if fused else 3 * ck * itemsize))
    tl = (budget - fixed) // max(per_col, 1)
    tl = max(128, (tl // 128) * 128)
    return int(min(tl, cap, _round_up(l_out, 128)))


def _encoder_kernel(in_ref, wa_ref, ba_ref, wb_ref, bb_ref, o_ref, *scratch,
                    K, stride, compute_dtype, approx_sigmoid, fused):
    # o_ref : (Cp, TL) output tile, channels-first (channels on the sublane axis).
    cp, tl = o_ref.shape
    if fused:
        # in_ref: (Cin, L_in_pad) -- full (padded) signal of the current sample.
        # Assemble the (Cin*K, TL) im2col patch for this L-tile into VMEM scratch.
        (p_scr,) = scratch
        cin = in_ref.shape[0]
        l0 = pl.multiple_of(pl.program_id(1) * (tl * stride), 128)
        for k in range(K):
            p_scr[k * cin:(k + 1) * cin, :] = in_ref[:, pl.ds(l0 + k, tl, stride=stride)]
        p = p_scr[...]
    else:
        # in_ref: (Cin*K, TL) -- pre-built patch tile (row index = k*Cin + c).
        p = in_ref[...]

    # Conv1d(Cin, Cout, K, stride) + bias + ReLU, f32 accumulation on the MXU.
    h = jnp.dot(wa_ref[...], p, preferred_element_type=jnp.float32)
    h = jnp.maximum(h + ba_ref[...], 0.0).astype(compute_dtype)

    # Fused 1x1 conv for both GLU halves: one (2*Cp, Cp) x (Cp, TL) matmul,
    # split at row Cp (sublane-aligned).
    z = jnp.dot(wb_ref[...], h, preferred_element_type=jnp.float32) + bb_ref[...]
    a = z[:cp, :]
    g = z[cp:, :]
    if approx_sigmoid:
        gate = pl.reciprocal(1.0 + jnp.exp(-g), approx=True)   # EUP path
    else:
        gate = jax.nn.sigmoid(g)
    o_ref[...] = (a * gate).astype(o_ref.dtype)                # GLU(dim=channel)


def encoder_forward(x, wa, ba, wb, bb, *, stride, compute_dtype=jnp.bfloat16,
                    tl=None, im2col_in_kernel=True):
    """x: (N, Cin, L).  wa: (Cout, Cin, K), ba: (Cout,),
    wb: (2*Cout, Cout, 1), bb: (2*Cout,).  Returns (N, Cout, L_out) in compute_dtype."""
    N, Cin, L = x.shape
    Cout, _, K = wa.shape
    L_out = (L - K) // stride + 1
    CK = Cin * K
    itemsize = jnp.dtype(compute_dtype).itemsize
    sub = 8 if itemsize >= 4 else 16                 # sublane multiple for the dtype
    Cp = _round_up(Cout, sub)
    vmem_limit = _vmem_limit_bytes()
    approx = jnp.dtype(compute_dtype) != jnp.dtype(jnp.float32)

    # --- parameters, channel-padded to Cp (sublane multiple only).
    # wa flattened so that patch row (k*Cin + c) multiplies wa[co, c, k].
    wa_m = jnp.transpose(wa, (0, 2, 1)).reshape(Cout, CK)
    wa_m = jnp.pad(wa_m, ((0, Cp - Cout), (0, 0))).astype(compute_dtype)
    ba_m = jnp.pad(ba, (0, Cp - Cout)).reshape(Cp, 1).astype(jnp.float32)
    wb2 = wb.reshape(2 * Cout, Cout)
    pad2 = ((0, Cp - Cout), (0, Cp - Cout))
    wb_m = jnp.concatenate([jnp.pad(wb2[:Cout], pad2),
                            jnp.pad(wb2[Cout:], pad2)], axis=0).astype(compute_dtype)
    bb_m = jnp.concatenate([jnp.pad(bb[:Cout], (0, Cp - Cout)),
                            jnp.pad(bb[Cout:], (0, Cp - Cout))])
    bb_m = bb_m.reshape(2 * Cp, 1).astype(jnp.float32)

    def run(fused):
        tile = tl if tl is not None else _pick_tile(
            L_out, Cin, CK, Cp, stride, itemsize, fused, vmem_limit)
        L_pad = _round_up(L_out, tile)
        grid = (N, L_pad // tile)

        if fused:
            # Whole (zero-padded) signal per sample stays resident in VMEM; the
            # kernel builds each tile's patch with strided lane reads.
            L_in_pad = _round_up(max(L, (L_pad - 1) * stride + K), 128)
            x_in = jnp.pad(x, ((0, 0), (0, 0), (0, L_in_pad - L))).astype(compute_dtype)
            in_spec = pl.BlockSpec((None, Cin, L_in_pad), lambda n, l: (n, 0, 0))
            scratch = [pltpu.VMEM((CK, tile), compute_dtype)]
        else:
            # Wrapper-side im2col via K strided slices + concat (no gather), but the
            # K/stride-expanded patch tensor still round-trips HBM.
            end = (L_out - 1) * stride + 1
            pieces = [lax.slice(x, (0, 0, k), (N, Cin, k + end), (1, 1, stride))
                      for k in range(K)]
            patches = jnp.concatenate(pieces, axis=1)            # (N, K*Cin, L_out)
            patches = jnp.pad(patches, ((0, 0), (0, 0), (0, L_pad - L_out)))
            x_in = patches.astype(compute_dtype)
            in_spec = pl.BlockSpec((None, CK, tile), lambda n, l: (n, 0, l))
            scratch = []

        flops = 2 * N * L_pad * (CK * Cp + 2 * Cp * Cp)
        transcendentals = N * L_pad * Cp
        bytes_accessed = (int(x_in.size) * itemsize + N * Cp * L_pad * itemsize
                          + (int(wa_m.size) + int(wb_m.size)) * itemsize + 3 * Cp * 4)

        kernel = functools.partial(
            _encoder_kernel, K=K, stride=stride, compute_dtype=compute_dtype,
            approx_sigmoid=approx, fused=fused)

        out = pl.pallas_call(
            kernel,
            out_shape=jax.ShapeDtypeStruct((N, Cp, L_pad), compute_dtype),
            grid_spec=pltpu.PrefetchScalarGridSpec(
                num_scalar_prefetch=0,
                grid=grid,
                in_specs=[
                    in_spec,
                    pl.BlockSpec((Cp, CK), lambda n, l: (0, 0)),
                    pl.BlockSpec((Cp, 1), lambda n, l: (0, 0)),
                    pl.BlockSpec((2 * Cp, Cp), lambda n, l: (0, 0)),
                    pl.BlockSpec((2 * Cp, 1), lambda n, l: (0, 0)),
                ],
                out_specs=pl.BlockSpec((None, Cp, tile), lambda n, l: (n, 0, l)),
                scratch_shapes=scratch),
            compiler_params=pltpu.CompilerParams(
                dimension_semantics=("parallel", "parallel"),
                vmem_limit_bytes=vmem_limit),
            cost_estimate=pl.CostEstimate(
                flops=flops, transcendentals=transcendentals,
                bytes_accessed=bytes_accessed),
        )(x_in, wa_m, ba_m, wb_m, bb_m)

        # Channel padding is a sublane-only no-op for typical Cout; strip length pad.
        return out[:, :Cout, :L_out]

    if im2col_in_kernel:
        try:
            return jax.block_until_ready(run(fused=True))
        except Exception:
            # TODO(synk): strided in-kernel im2col did not lower on this backend;
            # falling back to the wrapper-side patch build.
            pass
    return run(fused=False)


def encoder_reference(x, wa, ba, wb, bb, *, stride):
    """Pure-JAX reference matching PyTorch semantics."""
    N, Cin, L = x.shape
    Cout, _, K = wa.shape
    L_out = (L - K) // stride + 1
    starts = jnp.arange(L_out) * stride
    taps = starts[:, None] + jnp.arange(K)[None, :]
    patches = x[:, :, taps].transpose(0, 2, 1, 3).reshape(N * L_out, Cin * K)
    h = patches @ wa.reshape(Cout, Cin * K).T + ba[None, :]
    h = jnp.maximum(h, 0.0)
    z = h @ wb.reshape(2 * Cout, Cout).T + bb[None, :]
    a, b = z[:, :Cout], z[:, Cout:]
    y = a * jax.nn.sigmoid(b)
    return y.reshape(N, L_out, Cout).transpose(0, 2, 1)


if __name__ == "__main__":
    # Small shapes consistent with the module.
    N, Cin, L = 2, 4, 64
    Cout, K, stride = 16, 8, 4

    key = jax.random.PRNGKey(0)
    kx, kwa, kba, kwb, kbb = jax.random.split(key, 5)

    x = jax.random.normal(kx, (N, Cin, L), dtype=jnp.float32)
    wa = jax.random.normal(kwa, (Cout, Cin, K), dtype=jnp.float32) * (1.0 / (Cin * K) ** 0.5)
    ba = jax.random.normal(kba, (Cout,), dtype=jnp.float32) * 0.1
    wb = jax.random.normal(kwb, (2 * Cout, Cout, 1), dtype=jnp.float32) * (1.0 / Cout ** 0.5)
    bb = jax.random.normal(kbb, (2 * Cout,), dtype=jnp.float32) * 0.1

    y_ref = encoder_reference(x, wa, ba, wb, bb, stride=stride)
    L_out = (L - K) // stride + 1

    # f32 path (exact sigmoid): must match the reference tightly.
    y32 = encoder_forward(x, wa, ba, wb, bb, stride=stride, compute_dtype=jnp.float32)
    y32 = jax.block_until_ready(y32)
    assert y32.shape == (N, Cout, L_out), y32.shape
    assert jnp.allclose(y32, y_ref, atol=1e-5, rtol=1e-5), "f32 mismatch vs reference"

    # Wrapper-side patch path (exercised explicitly for coverage).
    y32p = encoder_forward(x, wa, ba, wb, bb, stride=stride,
                           compute_dtype=jnp.float32, im2col_in_kernel=False)
    y32p = jax.block_until_ready(y32p)
    assert jnp.allclose(y32p, y_ref, atol=1e-5, rtol=1e-5), "patch-path mismatch"

    # Default bf16 path (bf16 MXU inputs, f32 accumulation, EUP approx sigmoid).
    y16 = encoder_forward(x, wa, ba, wb, bb, stride=stride)
    y16 = jax.block_until_ready(y16)
    assert jnp.allclose(y16.astype(jnp.float32), y_ref, atol=1e-1, rtol=1e-1), \
        "bf16 mismatch vs reference"

    print("KERNEL_OK")
</pallas_src>

<mosaic_0001>
module attributes {stable_mosaic.version = 11 : i64} {
  func.func @_encoder_kernel(%arg0: i32, %arg1: i32, %arg2: memref<1x4x640xf32, #tpu.memory_space<vmem>>, %arg3: memref<16x32xf32, #tpu.memory_space<vmem>>, %arg4: memref<16x1xf32, #tpu.memory_space<vmem>>, %arg5: memref<32x16xf32, #tpu.memory_space<vmem>>, %arg6: memref<32x1xf32, #tpu.memory_space<vmem>>, %arg7: memref<1x16x128xf32, #tpu.memory_space<vmem>>, %arg8: memref<32x128xf32, #tpu.memory_space<vmem>>) attributes {dimension_semantics = [#tpu.dimension_semantics<parallel>, #tpu.dimension_semantics<parallel>], iteration_bounds = array<i64: 2, 1>, scalar_prefetch = 0 : i64, scratch_operands = 1 : i64, tpu.core_type = #tpu.core_type<tc>, window_params = [{transform_indices = @transform_0, window_bounds = array<i64: 1, 4, 640>}, {pipeline_mode = #tpu.pipeline_mode<synchronous>, transform_indices = @transform_1, window_bounds = array<i64: 16, 32>}, {pipeline_mode = #tpu.pipeline_mode<synchronous>, transform_indices = @transform_2, window_bounds = array<i64: 16, 1>}, {pipeline_mode = #tpu.pipeline_mode<synchronous>, transform_indices = @transform_3, window_bounds = array<i64: 32, 16>}, {pipeline_mode = #tpu.pipeline_mode<synchronous>, transform_indices = @transform_4, window_bounds = array<i64: 32, 1>}, {transform_indices = @transform_5, window_bounds = array<i64: 1, 16, 128>}]} {
    %c512_i32 = arith.constant 512 : i32
    %0 = arith.muli %arg1, %c512_i32 : i32
    %1 = tpu.assume_multiple %0, 128 : i32
    %c0_i32 = arith.constant 0 : i32
    %2 = arith.addi %1, %c0_i32 : i32
    %c0 = arith.constant 0 : index
    %c0_0 = arith.constant 0 : index
    %3 = arith.index_cast %2 : i32 to index
    %4 = tpu.strided_load %arg2[%c0, %c0_0, %3] {strides = array<i32: 1, 1, 4>} : memref<1x4x640xf32, #tpu.memory_space<vmem>>, vector<1x4x128xf32>
    %5 = vector.shape_cast %4 : vector<1x4x128xf32> to vector<4x128xf32>
    %c0_1 = arith.constant 0 : index
    %c0_2 = arith.constant 0 : index
    %6 = vector.load %arg8[%c0_1, %c0_2] : memref<32x128xf32, #tpu.memory_space<vmem>>, vector<4x128xf32>
    tpu.vector_store %arg8[%c0_1, %c0_2], %5 {strides = array<i32>} : memref<32x128xf32, #tpu.memory_space<vmem>>, vector<4x128xf32>,
    %c1_i32 = arith.constant 1 : i32
    %7 = arith.addi %1, %c1_i32 : i32
    %c0_3 = arith.constant 0 : index
    %c0_4 = arith.constant 0 : index
    %8 = arith.index_cast %7 : i32 to index
    %9 = tpu.strided_load %arg2[%c0_3, %c0_4, %8] {strides = array<i32: 1, 1, 4>} : memref<1x4x640xf32, #tpu.memory_space<vmem>>, vector<1x4x128xf32>
    %10 = vector.shape_cast %9 : vector<1x4x128xf32> to vector<4x128xf32>
    %c4 = arith.constant 4 : index
    %c0_5 = arith.constant 0 : index
    %11 = vector.load %arg8[%c4, %c0_5] : memref<32x128xf32, #tpu.memory_space<vmem>>, vector<4x128xf32>
    tpu.vector_store %arg8[%c4, %c0_5], %10 {strides = array<i32>} : memref<32x128xf32, #tpu.memory_space<vmem>>, vector<4x128xf32>,
    %c2_i32 = arith.constant 2 : i32
    %12 = arith.addi %1, %c2_i32 : i32
    %c0_6 = arith.constant 0 : index
    %c0_7 = arith.constant 0 : index
    %13 = arith.index_cast %12 : i32 to index
    %14 = tpu.strided_load %arg2[%c0_6, %c0_7, %13] {strides = array<i32: 1, 1, 4>} : memref<1x4x640xf32, #tpu.memory_space<vmem>>, vector<1x4x128xf32>
    %15 = vector.shape_cast %14 : vector<1x4x128xf32> to vector<4x128xf32>
    %c8 = arith.constant 8 : index
    %c0_8 = arith.constant 0 : index
    %16 = vector.load %arg8[%c8, %c0_8] : memref<32x128xf32, #tpu.memory_space<vmem>>, vector<4x128xf32>
    tpu.vector_store %arg8[%c8, %c0_8], %15 {strides = array<i32>} : memref<32x128xf32, #tpu.memory_space<vmem>>, vector<4x128xf32>,
    %c3_i32 = arith.constant 3 : i32
    %17 = arith.addi %1, %c3_i32 : i32
    %c0_9 = arith.constant 0 : index
    %c0_10 = arith.constant 0 : index
    %18 = arith.index_cast %17 : i32 to index
    %19 = tpu.strided_load %arg2[%c0_9, %c0_10, %18] {strides = array<i32: 1, 1, 4>} : memref<1x4x640xf32, #tpu.memory_space<vmem>>, vector<1x4x128xf32>
    %20 = vector.shape_cast %19 : vector<1x4x128xf32> to vector<4x128xf32>
    %c12 = arith.constant 12 : index
    %c0_11 = arith.constant 0 : index
    %21 = vector.load %arg8[%c12, %c0_11] : memref<32x128xf32, #tpu.memory_space<vmem>>, vector<4x128xf32>
    tpu.vector_store %arg8[%c12, %c0_11], %20 {strides = array<i32>} : memref<32x128xf32, #tpu.memory_space<vmem>>, vector<4x128xf32>,
    %c4_i32 = arith.constant 4 : i32
    %22 = arith.addi %1, %c4_i32 : i32
    %c0_12 = arith.constant 0 : index
    %c0_13 = arith.constant 0 : index
    %23 = arith.index_cast %22 : i32 to index
    %24 = tpu.strided_load %arg2[%c0_12, %c0_13, %23] {strides = array<i32: 1, 1, 4>} : memref<1x4x640xf32, #tpu.memory_space<vmem>>, vector<1x4x128xf32>
    %25 = vector.shape_cast %24 : vector<1x4x128xf32> to vector<4x128xf32>
    %c16 = arith.constant 16 : index
    %c0_14 = arith.constant 0 : index
    %26 = vector.load %arg8[%c16, %c0_14] : memref<32x128xf32, #tpu.memory_space<vmem>>, vector<4x128xf32>
    tpu.vector_store %arg8[%c16, %c0_14], %25 {strides = array<i32>} : memref<32x128xf32, #tpu.memory_space<vmem>>, vector<4x128xf32>,
    %c5_i32 = arith.constant 5 : i32
    %27 = arith.addi %1, %c5_i32 : i32
    %c0_15 = arith.constant 0 : index
    %c0_16 = arith.constant 0 : index
    %28 = arith.index_cast %27 : i32 to index
    %29 = tpu.strided_load %arg2[%c0_15, %c0_16, %28] {strides = array<i32: 1, 1, 4>} : memref<1x4x640xf32, #tpu.memory_space<vmem>>, vector<1x4x128xf32>
    %30 = vector.shape_cast %29 : vector<1x4x128xf32> to vector<4x128xf32>
    %c20 = arith.constant 20 : index
    %c0_17 = arith.constant 0 : index
    %31 = vector.load %arg8[%c20, %c0_17] : memref<32x128xf32, #tpu.memory_space<vmem>>, vector<4x128xf32>
    tpu.vector_store %arg8[%c20, %c0_17], %30 {strides = array<i32>} : memref<32x128xf32, #tpu.memory_space<vmem>>, vector<4x128xf32>,
    %c6_i32 = arith.constant 6 : i32
    %32 = arith.addi %1, %c6_i32 : i32
    %c0_18 = arith.constant 0 : index
    %c0_19 = arith.constant 0 : index
    %33 = arith.index_cast %32 : i32 to index
    %34 = tpu.strided_load %arg2[%c0_18, %c0_19, %33] {strides = array<i32: 1, 1, 4>} : memref<1x4x640xf32, #tpu.memory_space<vmem>>, vector<1x4x128xf32>
    %35 = vector.shape_cast %34 : vector<1x4x128xf32> to vector<4x128xf32>
    %c24 = arith.constant 24 : index
    %c0_20 = arith.constant 0 : index
    %36 = vector.load %arg8[%c24, %c0_20] : memref<32x128xf32, #tpu.memory_space<vmem>>, vector<4x128xf32>
    tpu.vector_store %arg8[%c24, %c0_20], %35 {strides = array<i32>} : memref<32x128xf32, #tpu.memory_space<vmem>>, vector<4x128xf32>,
    %c7_i32 = arith.constant 7 : i32
    %37 = arith.addi %1, %c7_i32 : i32
    %c0_21 = arith.constant 0 : index
    %c0_22 = arith.constant 0 : index
    %38 = arith.index_cast %37 : i32 to index
    %39 = tpu.strided_load %arg2[%c0_21, %c0_22, %38] {strides = array<i32: 1, 1, 4>} : memref<1x4x640xf32, #tpu.memory_space<vmem>>, vector<1x4x128xf32>
    %40 = vector.shape_cast %39 : vector<1x4x128xf32> to vector<4x128xf32>
    %c28 = arith.constant 28 : index
    %c0_23 = arith.constant 0 : index
    %41 = vector.load %arg8[%c28, %c0_23] : memref<32x128xf32, #tpu.memory_space<vmem>>, vector<4x128xf32>
    tpu.vector_store %arg8[%c28, %c0_23], %40 {strides = array<i32>} : memref<32x128xf32, #tpu.memory_space<vmem>>, vector<4x128xf32>,
    %c0_24 = arith.constant 0 : index
    %c0_25 = arith.constant 0 : index
    %42 = vector.load %arg8[%c0_24, %c0_25] : memref<32x128xf32, #tpu.memory_space<vmem>>, vector<32x128xf32>
    %c0_26 = arith.constant 0 : index
    %c0_27 = arith.constant 0 : index
    %43 = vector.load %arg3[%c0_26, %c0_27] : memref<16x32xf32, #tpu.memory_space<vmem>>, vector<16x32xf32>
    %cst = arith.constant dense<0.000000e+00> : vector<16x128xf32>
    %44 = tpu.matmul %43, %42, %cst {dimension_numbers = #tpu.dot_dimension_numbers<[1], [0], [0], [1], [0, 0, 1, 1], [], []>} : vector<16x32xf32>, vector<32x128xf32>, vector<16x128xf32> -> vector<16x128xf32>
    %c0_28 = arith.constant 0 : index
    %c0_29 = arith.constant 0 : index
    %45 = vector.load %arg4[%c0_28, %c0_29] : memref<16x1xf32, #tpu.memory_space<vmem>>, vector<16x1xf32>
    %46 = vector.broadcast %45 : vector<16x1xf32> to vector<16x128xf32>
    %47 = arith.addf %44, %46 : vector<16x128xf32>
    %cst_30 = arith.constant 0.000000e+00 : f32
    %48 = vector.broadcast %cst_30 : f32 to vector<16x128xf32>
    %49 = arith.maximumf %47, %48 : vector<16x128xf32>
    %c0_31 = arith.constant 0 : index
    %c0_32 = arith.constant 0 : index
    %50 = vector.load %arg5[%c0_31, %c0_32] : memref<32x16xf32, #tpu.memory_space<vmem>>, vector<32x16xf32>
    %cst_33 = arith.constant dense<0.000000e+00> : vector<32x128xf32>
    %51 = tpu.matmul %50, %49, %cst_33 {dimension_numbers = #tpu.dot_dimension_numbers<[1], [0], [0], [1], [0, 0, 1, 1], [], []>} : vector<32x16xf32>, vector<16x128xf32>, vector<32x128xf32> -> vector<32x128xf32>
    %c0_34 = arith.constant 0 : index
    %c0_35 = arith.constant 0 : index
    %52 = vector.load %arg6[%c0_34, %c0_35] : memref<32x1xf32, #tpu.memory_space<vmem>>, vector<32x1xf32>
    %53 = vector.broadcast %52 : vector<32x1xf32> to vector<32x128xf32>
    %54 = arith.addf %51, %53 : vector<32x128xf32>
    %55 = vector.extract_strided_slice %54 {offsets = [0, 0], sizes = [16, 128], strides = [1, 1]} : vector<32x128xf32> to vector<16x128xf32>
    %56 = vector.extract_strided_slice %54 {offsets = [16, 0], sizes = [16, 128], strides = [1, 1]} : vector<32x128xf32> to vector<16x128xf32>
    %57 = arith.negf %56 : vector<16x128xf32>
    %58 = math.exp %57 : vector<16x128xf32>
    %cst_36 = arith.constant 1.000000e+00 : f32
    %59 = vector.broadcast %cst_36 : f32 to vector<16x128xf32>
    %60 = arith.addf %59, %58 : vector<16x128xf32>
    %61 = arith.divf %59, %60 : vector<16x128xf32>
    %62 = arith.mulf %55, %61 : vector<16x128xf32>
    %c0_37 = arith.constant 0 : index
    %c0_38 = arith.constant 0 : index
    %c0_39 = arith.constant 0 : index
    %63 = vector.load %arg7[%c0_37, %c0_38, %c0_39] : memref<1x16x128xf32, #tpu.memory_space<vmem>>, vector<1x16x128xf32>
    %64 = vector.shape_cast %63 : vector<1x16x128xf32> to vector<16x128xf32>
    %65 = vector.shape_cast %62 : vector<16x128xf32> to vector<1x16x128xf32>
    tpu.vector_store %arg7[%c0_37, %c0_38, %c0_39], %65 {strides = array<i32>} : memref<1x16x128xf32, #tpu.memory_space<vmem>>, vector<1x16x128xf32>,
    return
  }
  func.func @transform_0(%arg0: i32, %arg1: i32) -> (i32, i32, i32) {
    %c0_i32 = arith.constant 0 : i32
    %c0_i32_0 = arith.constant 0 : i32
    %c0_i32_1 = arith.constant 0 : i32
    return %arg0, %c0_i32, %c0_i32_0 : i32, i32, i32
  }
  func.func @transform_1(%arg0: i32, %arg1: i32) -> (i32, i32) {
    %c0_i32 = arith.constant 0 : i32
    %c0_i32_0 = arith.constant 0 : i32
    %c0_i32_1 = arith.constant 0 : i32
    return %c0_i32, %c0_i32_0 : i32, i32
  }
  func.func @transform_2(%arg0: i32, %arg1: i32) -> (i32, i32) {
    %c0_i32 = arith.constant 0 : i32
    %c0_i32_0 = arith.constant 0 : i32
    %c0_i32_1 = arith.constant 0 : i32
    return %c0_i32, %c0_i32_0 : i32, i32
  }
  func.func @transform_3(%arg0: i32, %arg1: i32) -> (i32, i32) {
    %c0_i32 = arith.constant 0 : i32
    %c0_i32_0 = arith.constant 0 : i32
    %c0_i32_1 = arith.constant 0 : i32
    return %c0_i32, %c0_i32_0 : i32, i32
  }
  func.func @transform_4(%arg0: i32, %arg1: i32) -> (i32, i32) {
    %c0_i32 = arith.constant 0 : i32
    %c0_i32_0 = arith.constant 0 : i32
    %c0_i32_1 = arith.constant 0 : i32
    return %c0_i32, %c0_i32_0 : i32, i32
  }
  func.func @transform_5(%arg0: i32, %arg1: i32) -> (i32, i32, i32) {
    %c0_i32 = arith.constant 0 : i32
    %c0_i32_0 = arith.constant 0 : i32
    return %arg0, %c0_i32, %arg1 : i32, i32, i32
  }
}

module attributes {stable_mosaic.version = 11 : i64} {
  func.func @_encoder_kernel(%arg0: i32, %arg1: i32, %arg2: memref<1x32x128xf32, #tpu.memory_space<vmem>>, %arg3: memref<16x32xf32, #tpu.memory_space<vmem>>, %arg4: memref<16x1xf32, #tpu.memory_space<vmem>>, %arg5: memref<32x16xf32, #tpu.memory_space<vmem>>, %arg6: memref<32x1xf32, #tpu.memory_space<vmem>>, %arg7: memref<1x16x128xf32, #tpu.memory_space<vmem>>) attributes {dimension_semantics = [#tpu.dimension_semantics<parallel>, #tpu.dimension_semantics<parallel>], iteration_bounds = array<i64: 2, 1>, scalar_prefetch = 0 : i64, scratch_operands = 0 : i64, tpu.core_type = #tpu.core_type<tc>, window_params = [{transform_indices = @transform_0, window_bounds = array<i64: 1, 32, 128>}, {pipeline_mode = #tpu.pipeline_mode<synchronous>, transform_indices = @transform_1, window_bounds = array<i64: 16, 32>}, {pipeline_mode = #tpu.pipeline_mode<synchronous>, transform_indices = @transform_2, window_bounds = array<i64: 16, 1>}, {pipeline_mode = #tpu.pipeline_mode<synchronous>, transform_indices = @transform_3, window_bounds = array<i64: 32, 16>}, {pipeline_mode = #tpu.pipeline_mode<synchronous>, transform_indices = @transform_4, window_bounds = array<i64: 32, 1>}, {transform_indices = @transform_5, window_bounds = array<i64: 1, 16, 128>}]} {
    %c0 = arith.constant 0 : index
    %c0_0 = arith.constant 0 : index
    %c0_1 = arith.constant 0 : index
    %0 = vector.load %arg2[%c0, %c0_0, %c0_1] : memref<1x32x128xf32, #tpu.memory_space<vmem>>, vector<1x32x128xf32>
    %1 = vector.shape_cast %0 : vector<1x32x128xf32> to vector<32x128xf32>
    %c0_2 = arith.constant 0 : index
    %c0_3 = arith.constant 0 : index
    %2 = vector.load %arg3[%c0_2, %c0_3] : memref<16x32xf32, #tpu.memory_space<vmem>>, vector<16x32xf32>
    %cst = arith.constant dense<0.000000e+00> : vector<16x128xf32>
    %3 = tpu.matmul %2, %1, %cst {dimension_numbers = #tpu.dot_dimension_numbers<[1], [0], [0], [1], [0, 0, 1, 1], [], []>} : vector<16x32xf32>, vector<32x128xf32>, vector<16x128xf32> -> vector<16x128xf32>
    %c0_4 = arith.constant 0 : index
    %c0_5 = arith.constant 0 : index
    %4 = vector.load %arg4[%c0_4, %c0_5] : memref<16x1xf32, #tpu.memory_space<vmem>>, vector<16x1xf32>
    %5 = vector.broadcast %4 : vector<16x1xf32> to vector<16x128xf32>
    %6 = arith.addf %3, %5 : vector<16x128xf32>
    %cst_6 = arith.constant 0.000000e+00 : f32
    %7 = vector.broadcast %cst_6 : f32 to vector<16x128xf32>
    %8 = arith.maximumf %6, %7 : vector<16x128xf32>
    %c0_7 = arith.constant 0 : index
    %c0_8 = arith.constant 0 : index
    %9 = vector.load %arg5[%c0_7, %c0_8] : memref<32x16xf32, #tpu.memory_space<vmem>>, vector<32x16xf32>
    %cst_9 = arith.constant dense<0.000000e+00> : vector<32x128xf32>
    %10 = tpu.matmul %9, %8, %cst_9 {dimension_numbers = #tpu.dot_dimension_numbers<[1], [0], [0], [1], [0, 0, 1, 1], [], []>} : vector<32x16xf32>, vector<16x128xf32>, vector<32x128xf32> -> vector<32x128xf32>
    %c0_10 = arith.constant 0 : index
    %c0_11 = arith.constant 0 : index
    %11 = vector.load %arg6[%c0_10, %c0_11] : memref<32x1xf32, #tpu.memory_space<vmem>>, vector<32x1xf32>
    %12 = vector.broadcast %11 : vector<32x1xf32> to vector<32x128xf32>
    %13 = arith.addf %10, %12 : vector<32x128xf32>
    %14 = vector.extract_strided_slice %13 {offsets = [0, 0], sizes = [16, 128], strides = [1, 1]} : vector<32x128xf32> to vector<16x128xf32>
    %15 = vector.extract_strided_slice %13 {offsets = [16, 0], sizes = [16, 128], strides = [1, 1]} : vector<32x128xf32> to vector<16x128xf32>
    %16 = arith.negf %15 : vector<16x128xf32>
    %17 = math.exp %16 : vector<16x128xf32>
    %cst_12 = arith.constant 1.000000e+00 : f32
    %18 = vector.broadcast %cst_12 : f32 to vector<16x128xf32>
    %19 = arith.addf %18, %17 : vector<16x128xf32>
    %20 = arith.divf %18, %19 : vector<16x128xf32>
    %21 = arith.mulf %14, %20 : vector<16x128xf32>
    %c0_13 = arith.constant 0 : index
    %c0_14 = arith.constant 0 : index
    %c0_15 = arith.constant 0 : index
    %22 = vector.load %arg7[%c0_13, %c0_14, %c0_15] : memref<1x16x128xf32, #tpu.memory_space<vmem>>, vector<1x16x128xf32>
    %23 = vector.shape_cast %22 : vector<1x16x128xf32> to vector<16x128xf32>
    %24 = vector.shape_cast %21 : vector<16x128xf32> to vector<1x16x128xf32>
    tpu.vector_store %arg7[%c0_13, %c0_14, %c0_15], %24 {strides = array<i32>} : memref<1x16x128xf32, #tpu.memory_space<vmem>>, vector<1x16x128xf32>,
    return
  }
  func.func @transform_0(%arg0: i32, %arg1: i32) -> (i32, i32, i32) {
    %c0_i32 = arith.constant 0 : i32
    %c0_i32_0 = arith.constant 0 : i32
    return %arg0, %c0_i32, %arg1 : i32, i32, i32
  }
  func.func @transform_1(%arg0: i32, %arg1: i32) -> (i32, i32) {
    %c0_i32 = arith.constant 0 : i32
    %c0_i32_0 = arith.constant 0 : i32
    %c0_i32_1 = arith.constant 0 : i32
    return %c0_i32, %c0_i32_0 : i32, i32
  }
  func.func @transform_2(%arg0: i32, %arg1: i32) -> (i32, i32) {
    %c0_i32 = arith.constant 0 : i32
    %c0_i32_0 = arith.constant 0 : i32
    %c0_i32_1 = arith.constant 0 : i32
    return %c0_i32, %c0_i32_0 : i32, i32
  }
  func.func @transform_3(%arg0: i32, %arg1: i32) -> (i32, i32) {
    %c0_i32 = arith.constant 0 : i32
    %c0_i32_0 = arith.constant 0 : i32
    %c0_i32_1 = arith.constant 0 : i32
    return %c0_i32, %c0_i32_0 : i32, i32
  }
  func.func @transform_4(%arg0: i32, %arg1: i32) -> (i32, i32) {
    %c0_i32 = arith.constant 0 : i32
    %c0_i32_0 = arith.constant 0 : i32
    %c0_i32_1 = arith.constant 0 : i32
    return %c0_i32, %c0_i32_0 : i32, i32
  }
  func.func @transform_5(%arg0: i32, %arg1: i32) -> (i32, i32, i32) {
    %c0_i32 = arith.constant 0 : i32
    %c0_i32_0 = arith.constant 0 : i32
    return %arg0, %c0_i32, %arg1 : i32, i32, i32
  }
}

</mosaic_0001>

<llo_original>
// kernel: tpu_custom_call.1
$region0: #{tpu_custom_call.1}
  #allocation0 [shape = 'u32[]', space=smem, size = 0x4, offset = 0x4, fixed_abs, tag = 'smem constant byte address 0x4 - core index']
  #allocation1 [shape = 'u32[72,128]{1,0:T(1,128)}', space=vmem, size = 0x9000, scoped, tag = 'internal scratch']
  %s0 = inlined_call_operand.vmem [shape: f32[2,32,128], index: 0, kind: input, shape index: {}]
  %s1 = inlined_call_operand.vmem [shape: f32[16,32], index: 1, kind: input, shape index: {}]
  %s2 = inlined_call_operand.vmem [shape: f32[16,1], index: 2, kind: input, shape index: {}]
  %s3 = inlined_call_operand.vmem [shape: f32[32,16], index: 3, kind: input, shape index: {}]
  %s4 = inlined_call_operand.vmem [shape: f32[32,1], index: 4, kind: input, shape index: {}]
  %s5 = inlined_call_operand.hbm [shape: f32[2,16,128], index: 5, kind: output, shape index: {}]
  %s6 = sld [smem:[#allocation0]]
  $region53: #{tpu_custom_call.1} parent=0
    _
  %s8 = ssub.s32 1, %s6
  %s9 = scalar_select 0, %s8, %s6
  $region1: #{tpu_custom_call.1} parent=0
    #allocation2 [shape = 'u8[16384]{0}', space=vmem, size = 0x4000, scoped, tag = 'output window, operand 0']
    #allocation3 [shape = 's32[2]{0}', space=sflag, size = 0x8, scoped, tag = 'scoped memory for tpu_custom_call.1']
    %10 = vsyncpa [#allocation3], 0
    %s11 = scalar_lea.sflag [#allocation3], 1
    %12 = vsyncpa %s11, 0
    loop: start=0, step=1, limit=4
    $region2: #{tpu_custom_call.1} parent=1 // loop_pre_header
      _
    $region3: #{tpu_custom_call.1} parent=1 // loop_header
      %s14 = sphi 0, %s18
      %p15 = scmp.ge.s32.totalorder %s14, 4
      %s21 = sphi 0, %s33
      %s22 = sphi 0, %s29
      %s23 = sphi 0, %s21
      %s24 = sphi 0, %s22
      %s25 = sphi 0, %s23
      %s26 = sphi 0, %s24
      %s38 = sphi 0, %s40
      %s41 = sphi 0, %s38
      %s42 = sphi 0, %s41
      %s58 = sphi 0, %s42
      %s62 = sphi 0, %s62
      %s64 = sphi 0, %s62
      %s65 = sphi 0, %s64
      %s79 = sphi 0, %s65
      %s83 = sphi 0, %s83
      %s85 = sphi 0, %s83
      %s86 = sphi 0, %s85
      %s100 = sphi 0, %s86
      %s104 = sphi 0, %s104
      %s106 = sphi 0, %s104
      %s107 = sphi 0, %s106
      %s121 = sphi 0, %s107
      %s125 = sphi 0, %s125
      %s127 = sphi 0, %s125
      %s128 = sphi 0, %s127
      %s142 = sphi 0, %s128
      %s150 = sphi 0, %s152
      %s153 = sphi 0, %s150
      %s154 = sphi 0, %s153
      %s170 = sphi 0, %s154
    $region4: #{tpu_custom_call.1} parent=1 // loop_header_branch
      %17 = sbr.rel (%p15) target = $region8
    $region5: #{tpu_custom_call.1} parent=1 // loop_body
      %s19 = ssub.s32 %s14, 1
      %s20 = ssub.s32 %s14, 2
      %s27 = sadd.s32 1, %s22
      %p28 = scmp.ge.s32.totalorder %s27, 1
      %s29 = scalar_select %p28, 0, %s27
      %s30 = sadd.s32 1, %s21
      %s31 = scalar_select %p28, %s30, %s21
      %p32 = scmp.ge.s32.totalorder %s31, 2
      %s33 = scalar_select %p32, 0, %s31
      %s34 = ssub.s32 %s21, %s33
      %s35 = ssub.s32 %s22, %s29
      %s36 = sor.u32 %s34, %s35
      %p37 = scmp.eq.s32.totalorder %s36, 0
      %s39 = sadd.s32 %s38, 1
      %s40 = scalar_select %p37, %s38, %s39
      %p43 = pneg %p37
      %p44 = scmp.eq.s32.totalorder %s14, 1
      %p45 = por %p43, %p44
      %p46 = scmp.ne.s32.totalorder %s38, %s41
      %p47 = scmp.eq.s32.totalorder %s14, 0
      %p48 = por %p46, %p47
      %p49 = scmp.ne.s32.totalorder %s38, %s41
      %p50 = scmp.eq.s32.totalorder %s19, 1
      %p51 = por %p49, %p50
      %p52 = scmp.ne.s32.totalorder %s41, %s42
      %p53 = scmp.eq.s32.totalorder %s19, 0
      %p54 = por %p52, %p53
      %p55 = scmp.ne.s32.totalorder %s41, %s42
      %p56 = scmp.eq.s32.totalorder %s20, 1
      %p57 = por %p55, %p56
      %p59 = scmp.ne.s32.totalorder %s42, %s58
      %p60 = scmp.eq.s32.totalorder %s20, 0
      %p61 = por %p59, %p60
      %s63 = sadd.s32 %s62, 1
      %p66 = scmp.eq.s32.totalorder %s14, 1
      %p67 = scmp.ne.s32.totalorder %s62, %s64
      %p68 = scmp.eq.s32.totalorder %s14, 0
      %p69 = por %p67, %p68
      %p70 = scmp.ne.s32.totalorder %s62, %s64
      %p71 = scmp.eq.s32.totalorder %s19, 1
      %p72 = por %p70, %p71
      %p73 = scmp.ne.s32.totalorder %s64, %s65
      %p74 = scmp.eq.s32.totalorder %s19, 0
      %p75 = por %p73, %p74
      %p76 = scmp.ne.s32.totalorder %s64, %s65
      %p77 = scmp.eq.s32.totalorder %s20, 1
      %p78 = por %p76, %p77
      %p80 = scmp.ne.s32.totalorder %s65, %s79
      %p81 = scmp.eq.s32.totalorder %s20, 0
      %p82 = por %p80, %p81
      %s84 = sadd.s32 %s83, 1
      %p87 = scmp.eq.s32.totalorder %s14, 1
      %p88 = scmp.ne.s32.totalorder %s83, %s85
      %p89 = scmp.eq.s32.totalorder %s14, 0
      %p90 = por %p88, %p89
      %p91 = scmp.ne.s32.totalorder %s83, %s85
      %p92 = scmp.eq.s32.totalorder %s19, 1
      %p93 = por %p91, %p92
      %p94 = scmp.ne.s32.totalorder %s85, %s86
      %p95 = scmp.eq.s32.totalorder %s19, 0
      %p96 = por %p94, %p95
      %p97 = scmp.ne.s32.totalorder %s85, %s86
      %p98 = scmp.eq.s32.totalorder %s20, 1
      %p99 = por %p97, %p98
      %p101 = scmp.ne.s32.totalorder %s86, %s100
      %p102 = scmp.eq.s32.totalorder %s20, 0
      %p103 = por %p101, %p102
      %s105 = sadd.s32 %s104, 1
      %p108 = scmp.eq.s32.totalorder %s14, 1
      %p109 = scmp.ne.s32.totalorder %s104, %s106
      %p110 = scmp.eq.s32.totalorder %s14, 0
      %p111 = por %p109, %p110
      %p112 = scmp.ne.s32.totalorder %s104, %s106
      %p113 = scmp.eq.s32.totalorder %s19, 1
      %p114 = por %p112, %p113
      %p115 = scmp.ne.s32.totalorder %s106, %s107
      %p116 = scmp.eq.s32.totalorder %s19, 0
      %p117 = por %p115, %p116
      %p118 = scmp.ne.s32.totalorder %s106, %s107
      %p119 = scmp.eq.s32.totalorder %s20, 1
      %p120 = por %p118, %p119
      %p122 = scmp.ne.s32.totalorder %s107, %s121
      %p123 = scmp.eq.s32.totalorder %s20, 0
      %p124 = por %p122, %p123
      %s126 = sadd.s32 %s125, 1
      %p129 = scmp.eq.s32.totalorder %s14, 1
      %p130 = scmp.ne.s32.totalorder %s125, %s127
      %p131 = scmp.eq.s32.totalorder %s14, 0
      %p132 = por %p130, %p131
      %p133 = scmp.ne.s32.totalorder %s125, %s127
      %p134 = scmp.eq.s32.totalorder %s19, 1
      %p135 = por %p133, %p134
      %p136 = scmp.ne.s32.totalorder %s127, %s128
      %p137 = scmp.eq.s32.totalorder %s19, 0
      %p138 = por %p136, %p137
      %p139 = scmp.ne.s32.totalorder %s127, %s128
      %p140 = scmp.eq.s32.totalorder %s20, 1
      %p141 = por %p139, %p140
      %p143 = scmp.ne.s32.totalorder %s128, %s142
      %p144 = scmp.eq.s32.totalorder %s20, 0
      %p145 = por %p143, %p144
      %s146 = ssub.s32 %s21, %s33
      %s147 = ssub.s32 %s22, %s29
      %s148 = sor.u32 %s146, %s147
      %p149 = scmp.eq.s32.totalorder %s148, 0
      %s151 = sadd.s32 %s150, 1
      %s152 = scalar_select %p149, %s150, %s151
      %p155 = pneg %p149
      %p156 = scmp.eq.s32.totalorder %s14, 1
      %p157 = por %p155, %p156
      %p158 = scmp.ne.s32.totalorder %s150, %s153
      %p159 = scmp.eq.s32.totalorder %s14, 0
      %p160 = por %p158, %p159
      %p161 = scmp.ne.s32.totalorder %s150, %s153
      %p162 = scmp.eq.s32.totalorder %s19, 1
      %p163 = por %p161, %p162
      %p164 = scmp.ne.s32.totalorder %s153, %s154
      %p165 = scmp.eq.s32.totalorder %s19, 0
      %p166 = por %p164, %p165
      %p167 = scmp.ne.s32.totalorder %s153, %s154
      %p168 = scmp.eq.s32.totalorder %s20, 1
      %p169 = por %p167, %p168
      %p171 = scmp.ne.s32.totalorder %s154, %s170
      %p172 = scmp.eq.s32.totalorder %s20, 0
      %p173 = por %p171, %p172
      %p174 = scmp.le.s32.totalorder 1, %s14
      %p175 = scmp.lt.s32.totalorder %s14, 3
      %p176 = pnand %p174, %p175
      %p177 = pneg %p176
      // Predicated region
      $region9: #{tpu_custom_call.1} parent=5 // pred_check
        _
      $region10: #{tpu_custom_call.1} parent=5 // pred_check_branch
        %179 = sbr.rel (%p176) target = $region12
      $region11: #{tpu_custom_call.1} parent=5 // pred_region
        %s180 = ssub.s32 %s14, 1
        // Predicated region
        $region13: #{tpu_custom_call.1} parent=11 // pred_check
          %p181 = pneg %p75
        $region14: #{tpu_custom_call.1} parent=11 // pred_check_branch
          %183 = sbr.rel (%p181) target = $region16
        $region15: #{tpu_custom_call.1} parent=11 // pred_region
          _
        $region16: #{tpu_custom_call.1} parent=11 // pred_fallthru
          _
        // Predicated region
        $region17: #{tpu_custom_call.1} parent=11 // pred_check
          %p184 = pneg %p96
        $region18: #{tpu_custom_call.1} parent=11 // pred_check_branch
          %186 = sbr.rel (%p184) target = $region20
        $region19: #{tpu_custom_call.1} parent=11 // pred_region
          _
        $region20: #{tpu_custom_call.1} parent=11 // pred_fallthru
          _
        // Predicated region
        $region21: #{tpu_custom_call.1} parent=11 // pred_check
          %p187 = pneg %p117
        $region22: #{tpu_custom_call.1} parent=11 // pred_check_branch
          %189 = sbr.rel (%p187) target = $region24
        $region23: #{tpu_custom_call.1} parent=11 // pred_region
          _
        $region24: #{tpu_custom_call.1} parent=11 // pred_fallthru
          _
        // Predicated region
        $region25: #{tpu_custom_call.1} parent=11 // pred_check
          %p190 = pneg %p138
        $region26: #{tpu_custom_call.1} parent=11 // pred_check_branch
          %192 = sbr.rel (%p190) target = $region28
        $region27: #{tpu_custom_call.1} parent=11 // pred_region
          _
        $region28: #{tpu_custom_call.1} parent=11 // pred_fallthru
          _
      $region12: #{tpu_custom_call.1} parent=5 // pred_fallthru
        _
      %p193 = scmp.lt.s32.totalorder %s14, 2
      // Predicated region
      $region29: #{tpu_custom_call.1} parent=5 // pred_check
        %p194 = pneg %p193
      $region30: #{tpu_custom_call.1} parent=5 // pred_check_branch
        %196 = sbr.rel (%p194) target = $region32
      $region31: #{tpu_custom_call.1} parent=5 // pred_region
        // Predicated region
        $region33: #{tpu_custom_call.1} parent=31 // pred_check
          %p197 = pneg %p48
        $region34: #{tpu_custom_call.1} parent=31 // pred_check_branch
          %199 = sbr.rel (%p197) target = $region36
        $region35: #{tpu_custom_call.1} parent=31 // pred_region
          %p200 = scmp.lt.s32.totalorder %s21, 1
          %s201 = scalar_select %p200, %s21, 1
          %p202 = scmp.lt.s32.totalorder %s22, 0
          %s203 = scalar_select %p202, %s22, 0
          %s204 = smul.addr %s201, 4
          %s205 = sadd.s32 %s203, %s204
          %s206 = smul.addr %s205, 8
          %s207 = scalar_lea.vmem %s0, %s206
        $region36: #{tpu_custom_call.1} parent=31 // pred_fallthru
          _
      $region32: #{tpu_custom_call.1} parent=5 // pred_fallthru
        _
      %p208 = scmp.le.s32.totalorder 1, %s14
      %p209 = scmp.lt.s32.totalorder %s14, 3
      %p210 = pnand %p208, %p209
      %p211 = pneg %p210
      // Predicated region
      $region37: #{tpu_custom_call.1} parent=5 // pred_check
        _
      $region38: #{tpu_custom_call.1} parent=5 // pred_check_branch
        %213 = sbr.rel (%p210) target = $region40
      $region39: #{tpu_custom_call.1} parent=5 // pred_region
        %s214 = ssub.s32 %s14, 1
        %p215 = scmp.lt.s32.totalorder %s23, 1
        %s216 = scalar_select %p215, %s23, 1
        %p217 = scmp.lt.s32.totalorder %s24, 0
        %s218 = scalar_select %p217, %s24, 0
        %s219 = smul.addr %s216, 4
        %s220 = sadd.s32 %s218, %s219
        %s221 = smul.addr %s220, 8
        %s222 = scalar_lea.vmem %s0, %s221
        %p223 = pneg %p54
        %p224 = pneg %p51
        %p225 = pneg %p75
        %p226 = pneg %p72
        %p227 = pneg %p96
        %p228 = pneg %p93
        %p229 = pneg %p117
        %p230 = pneg %p114
        %p231 = pneg %p138
        %p232 = pneg %p135
        %p233 = pneg %p166
        %p234 = pneg %p163
        %s235 = sand.u32 %s153, 1
        %s236 = scalar_lea.sflag [#allocation3], %s235
        %s237 = sand.u32 %s153, 1
        %s238 = smul.addr %s237, 16
        %s239 = scalar_lea.vmem [#allocation2], %s238
        %p240 = scmp.lt.s32.totalorder %s23, 1
        %s241 = scalar_select %p240, %s23, 1
        %p242 = scmp.lt.s32.totalorder %s24, 0
        %s243 = scalar_select %p242, %s24, 0
        %s244 = smul.addr %s241, 4
        %s245 = sadd.s32 %s243, %s244
        %s246 = smul.addr %s245, 8
        %s247 = scalar_lea.vmem %s0, %s246
        %v248 = vld [vmem:[%s247] sm:$0xff]
        %v249 = vld [vmem:[%s247 + $0x8] sm:$0xff]
        %v250 = vld [vmem:[%s247 + $0x10] sm:$0xff]
        %v251 = vld [vmem:[%s247 + $0x18] sm:$0xff]
        %v252 = vld [vmem:[%s1] sm:$0xff]
        %v253 = vld [vmem:[%s1 + $0x8] sm:$0xff]
        %v254 = vld [vmem:[%s2] sm:$0xff]
        %v255 = vld [vmem:[%s2 + $0x8] sm:$0xff]
        %257 = vset.pattern.permute.xlu0 0
        %258 = vperm.xlu0 %257, %v254
        %v259 = vpop.permute.xlu0 %258
        %262 = vset.pattern.permute.xlu0 0
        %263 = vperm.xlu0 %262, %v255
        %v264 = vpop.permute.xlu0 %263
        %vm266 = vcmask 261120
        %v268 = vsel %vm266, %v252, 0
        %v271 = vsel %vm266, %v253, 0
        %273 = vmatpush.msra.mxu0 0.0
        %274 = vmatpush.msra.mxu0 0.0
        %275 = vmatpush.msra.mxu0 0.0
        %276 = vmatpush.msra.mxu0 0.0
        %277 = vmatpush.msra.mxu0 0.0
        %278 = vmatpush.msra.mxu0 0.0
        %279 = vmatpush.msra.mxu0 0.0
        %280 = vmatpush.msra.mxu0 0.0
        %281 = vmatpush.msra.mxu0 0.0
        %282 = vmatpush.msra.mxu0 0.0
        %283 = vmatpush.msra.mxu0 0.0
        %284 = vmatpush.msra.mxu0 0.0
        %285 = vmatpush.msra.mxu0 %v251
        %286 = vmatpush.msra.mxu0 %v250
        %287 = vmatpush.msra.mxu0 %v249
        %288 = vmatpush.msra.mxu0 %v248
        %289 = vmatmul.f32.gmra.mxu0 %v268
        %v290 = vpop.f32.mrf.mxu0
        %v291 = vadd.f32 %v259, %v290
        %292 = vmatmul.f32.gmra.mxu0 %v271
        %v293 = vpop.f32.mrf.mxu0
        %v294 = vadd.f32 %v264, %v293
        %295 = vdwg.mxu0
        %v296 = vmax.f32 %v291, 0.0
        %v297 = vmax.f32 %v294, 0.0
        %v298 = vld [vmem:[%s3] sm:$0xff]
        %v299 = vld [vmem:[%s3 + $0x8] sm:$0xff]
        %v300 = vld [vmem:[%s3 + $0x10] sm:$0xff]
        %v301 = vld [vmem:[%s3 + $0x18] sm:$0xff]
        %v302 = vld [vmem:[%s4] sm:$0xff]
        %v303 = vld [vmem:[%s4 + $0x8] sm:$0xff]
        %v304 = vld [vmem:[%s4 + $0x10] sm:$0xff]
        %v305 = vld [vmem:[%s4 + $0x18] sm:$0xff]
        %307 = vset.pattern.permute.xlu0 0
        %308 = vperm.xlu0 %307, %v302
        %v309 = vpop.permute.xlu0 %308
        %312 = vset.pattern.permute.xlu0 0
        %313 = vperm.xlu0 %312, %v303
        %v314 = vpop.permute.xlu0 %313
        %317 = vset.pattern.permute.xlu0 0
        %318 = vperm.xlu0 %317, %v304
        %v319 = vpop.permute.xlu0 %318
        %322 = vset.pattern.permute.xlu0 0
        %323 = vperm.xlu0 %322, %v305
        %v324 = vpop.permute.xlu0 %323
        %vm326 = vcmask 130048
        %v328 = vsel %vm326, %v298, 0
        %v331 = vsel %vm326, %v299, 0
        %v334 = vsel %vm326, %v300, 0
        %v337 = vsel %vm326, %v301, 0
        %339 = vmatpush.msra.mxu0 0.0
        %340 = vmatpush.msra.mxu0 0.0
        %341 = vmatpush.msra.mxu0 0.0
        %342 = vmatpush.msra.mxu0 0.0
        %343 = vmatpush.msra.mxu0 0.0
        %344 = vmatpush.msra.mxu0 0.0
        %345 = vmatpush.msra.mxu0 0.0
        %346 = vmatpush.msra.mxu0 0.0
        %347 = vmatpush.msra.mxu0 0.0
        %348 = vmatpush.msra.mxu0 0.0
        %349 = vmatpush.msra.mxu0 0.0
        %350 = vmatpush.msra.mxu0 0.0
        %351 = vmatpush.msra.mxu0 0.0
        %352 = vmatpush.msra.mxu0 0.0
        %353 = vmatpush.msra.mxu0 %v297
        %354 = vmatpush.msra.mxu0 %v296
        %355 = vmatmul.f32.gmra.mxu0 %v328
        %v356 = vpop.f32.mrf.mxu0
        %v357 = vadd.f32 %v309, %v356
        %358 = vmatmul.f32.gmra.mxu0 %v331
        %v359 = vpop.f32.mrf.mxu0
        %v360 = vadd.f32 %v314, %v359
        %361 = vmatmul.f32.gmra.mxu0 %v334
        %v362 = vpop.f32.mrf.mxu0
        %v363 = vadd.f32 %v319, %v362
        %364 = vmatmul.f32.gmra.mxu0 %v337
        %v365 = vpop.f32.mrf.mxu0
        %v366 = vadd.f32 %v324, %v365
        %367 = vdwg.mxu0
        %v368 = vxor.u32 %v363, 2147483648
        %v369 = vxor.u32 %v366, 2147483648
        %v370 = vmul.f32 %v368, 1.442695
        %v371 = vpow.pop %v370
        %v372 = vmul.f32 %v369, 1.442695
        %v373 = vpow.pop %v372
        %v374 = vadd.f32 %v371, 1.0
        %v375 = vadd.f32 %v373, 1.0
        %v376 = vrcp.pop %v374
        %v377 = vmul.f32 %v374, %v376
        %v378 = vsub.f32 1.0, %v377
        %v379 = vmul.f32 %v376, %v378
        %v380 = vadd.f32 %v376, %v379
        %vm381 = vweird.f32 %v374
        %vm382 = vweird.f32 %v376
        %vm383 = vmor %vm381, %vm382
        %v384 = vsel %vm383, %v376, %v380
        %v385 = vand.u32 2147483647, %v374
        %vm386 = vcmp.eq.f32.partialorder %v385, 8.507059e+37
        %v387 = vand.u32 %v374, 2147483648
        %v388 = vor.u32 1.1754944e-38, %v387
        %v389 = vsel %vm386, %v388, %v384
        %v390 = vmul.f32 1.0, %v389
        %v391 = vrcp.pop %v375
        %v392 = vmul.f32 %v375, %v391
        %v393 = vsub.f32 1.0, %v392
        %v394 = vmul.f32 %v391, %v393
        %v395 = vadd.f32 %v391, %v394
        %vm396 = vweird.f32 %v375
        %vm397 = vweird.f32 %v391
        %vm398 = vmor %vm396, %vm397
        %v399 = vsel %vm398, %v391, %v395
        %v400 = vand.u32 2147483647, %v375
        %vm401 = vcmp.eq.f32.partialorder %v400, 8.507059e+37
        %v402 = vand.u32 %v375, 2147483648
        %v403 = vor.u32 1.1754944e-38, %v402
        %v404 = vsel %vm401, %v403, %v399
        %v405 = vmul.f32 1.0, %v404
        %v406 = vmul.f32 %v357, %v390
        %v407 = vmul.f32 %v360, %v405
        %408 = vst [vmem:[%s239] sm:$0xff] %v406
        %409 = vst [vmem:[%s239 + $0x8] sm:$0xff] %v407
        %s410 = sand.u32 %s153, 1
        %s411 = scalar_lea.sflag [#allocation3], %s410
        %s412 = sand.u32 %s153, 1
        %s413 = smul.addr %s412, 16
        %s414 = scalar_lea.vmem [#allocation2], %s413
        // Predicated region
        $region41: #{tpu_custom_call.1} parent=39 // pred_check
          %p415 = pneg %p163
        $region42: #{tpu_custom_call.1} parent=39 // pred_check_branch
          %417 = sbr.rel (%p415) target = $region44
        $region43: #{tpu_custom_call.1} parent=39 // pred_region
          %419 = vsyncadd %s411, 0
          %s420 = smul.addr %s23, 2
          %s421 = sadd.s32 %s24, %s420
          %s422 = smul.addr %s421, 8
          %s423 = scalar_lea.hbm %s5, %s422
          %s424 = sshll.u32 %s414, 4
          %s425 = int_to_ptr.vmem [resolvable:$true] %s424
          %s426 = sshll.u32 %s423, 4
          %s427 = int_to_ptr.hbm [resolvable:$true] %s426
          %432 = dma.vmem_to_hbm [thread:$0]  %s425, 256, %s427, %s411, 128, 128, 8
        $region44: #{tpu_custom_call.1} parent=39 // pred_fallthru
          _
      $region40: #{tpu_custom_call.1} parent=5 // pred_fallthru
        _
      %p433 = scmp.le.s32.totalorder 2, %s14
      // Predicated region
      $region45: #{tpu_custom_call.1} parent=5 // pred_check
        %p434 = pneg %p433
      $region46: #{tpu_custom_call.1} parent=5 // pred_check_branch
        %436 = sbr.rel (%p434) target = $region48
      $region47: #{tpu_custom_call.1} parent=5 // pred_region
        %s437 = ssub.s32 %s14, 2
        // Predicated region
        $region49: #{tpu_custom_call.1} parent=47 // pred_check
          %p438 = pneg %p169
        $region50: #{tpu_custom_call.1} parent=47 // pred_check_branch
          %440 = sbr.rel (%p438) target = $region52
        $region51: #{tpu_custom_call.1} parent=47 // pred_region
          %s441 = sand.u32 %s154, 1
          %s442 = scalar_lea.sflag [#allocation3], %s441
          %s443 = sand.u32 %s154, 1
          %s444 = smul.addr %s443, 16
          %s445 = scalar_lea.vmem [#allocation2], %s444
          %447 = dma.done %s442, 256
        $region52: #{tpu_custom_call.1} parent=47 // pred_fallthru
          _
      $region48: #{tpu_custom_call.1} parent=5 // pred_fallthru
        _
    $region6: #{tpu_custom_call.1} parent=1 // loop_footer
      %s18 = sadd.s32 1, %s14
    $region7: #{tpu_custom_call.1} parent=1 // loop_footer_branch
      %13 = sbr.rel target = $region3
    $region8: #{tpu_custom_call.1} parent=1 // loop_exit
      _
    %448 = vsyncpa [#allocation3], 1
    %s449 = scalar_lea.sflag [#allocation3], 1
    %450 = vsyncpa %s449, 1

</llo_original>
